<compile_context>
chip_gen: v7x
topology: tpu7x:2x2x1
jax: 0.10.0
libtpu: 0.0.40
codegen_flags: <defaults>
</compile_context>

<pallas_src>
import numpy as np
import jax
import jax.numpy as jnp
from jax.experimental import pallas as pl
from jax.experimental.pallas import tpu as pltpu

# Fixed hyper-parameters implied by the module:
#   fc1 = Linear(64 * 2, 128)  =>  seq length after two MaxPool1d(2) is 2  =>  L = 8
SEQ_LEN = 8
K = 3                     # conv kernel size
C1, C2, HID = 32, 64, 128
NUM_CLASSES = 4           # stand-in for len(np.unique(target)) in the original script
NC_PAD = 128              # lane-dense padded output width (sliced back to NUM_CLASSES)
L1 = SEQ_LEN              # length after conv1
L2 = SEQ_LEN // 2         # length after pool1 / conv2
L3 = SEQ_LEN // 4         # length after pool2


def cnn_kernel(x1_ref, w1_ref, b1_ref, w2_ref, b2_ref,
               wf1_ref, bf1_ref, wf2_ref, bf2_ref, out_ref):
    # x1_ref: (TB, K*L1) im2col'd, zero-padded input (batch on sublanes, lanes dense)

    # ---- conv1 + bias + ReLU as ONE matmul: (TB,24) @ (24, L1*C1) -> (TB, 256) ----
    y1 = jnp.dot(x1_ref[...], w1_ref[...], preferred_element_type=jnp.float32)
    y1 = jnp.maximum(y1 + b1_ref[...], 0.0)

    # ---- maxpool(2) over length: pairwise max of adjacent 32-wide channel blocks ----
    pooled = [jnp.maximum(y1[:, (2 * j) * C1:(2 * j + 1) * C1],
                          y1[:, (2 * j + 1) * C1:(2 * j + 2) * C1])
              for j in range(L2)]
    p_cat = jnp.concatenate(pooled, axis=1)                     # (TB, 128)

    # ---- conv2 + bias + ReLU as ONE matmul (banded weight built in wrapper) ----
    y2 = jnp.dot(p_cat, w2_ref[...], preferred_element_type=jnp.float32)
    y2 = jnp.maximum(y2 + b2_ref[...], 0.0)                     # (TB, 256)

    # ---- maxpool(2) over length ----
    r0 = jnp.maximum(y2[:, 0:C2], y2[:, C2:2 * C2])             # (TB, 64) pos 0
    r1 = jnp.maximum(y2[:, 2 * C2:3 * C2], y2[:, 3 * C2:4 * C2])  # (TB, 64) pos 1
    flat = jnp.concatenate([r0, r1], axis=1)                    # (TB, 128)

    # ---- fc1 + ReLU (weight row-permuted to match PyTorch channel-major flatten) ----
    h = jnp.dot(flat, wf1_ref[...], preferred_element_type=jnp.float32)
    h = jnp.maximum(h + bf1_ref[...], 0.0)                      # (TB, 128)

    # ---- fc2 (zero-padded to lane-dense width; sliced back in wrapper) ----
    out_ref[...] = (jnp.dot(h, wf2_ref[...], preferred_element_type=jnp.float32)
                    + bf2_ref[...])                             # (TB, 128)


def _round_up(x, m):
    return (x + m - 1) // m * m


def cnn_forward(x, params, *, batch_tile=256):
    """x: (B, 1, SEQ_LEN) float32 in PyTorch NCW layout."""
    w1, b1, w2, b2, fw1, fb1, fw2, fb2 = params                 # PyTorch layouts
    B = x.shape[0]
    tb = min(batch_tile, _round_up(B, 8))                       # batch tile (sublane-aligned)
    b_pad = _round_up(B, tb)

    # ---- wrapper-side layout plumbing (pure data movement / weight re-layout) ----
    # zero-padded input, im2col over the 3 conv1 taps -> (B_pad, 24)
    xp = jnp.pad(x[:, 0, :], ((0, b_pad - B), (1, 1)))          # (B_pad, 10)
    x1 = jnp.concatenate([xp[:, k:k + SEQ_LEN] for k in range(K)], axis=1)

    # conv1 weight as block-diagonal (K*L1, L1*C1): row k*L1+l', col l*C1+c = w1[c,0,k]·[l'==l]
    w1k = jnp.transpose(w1, (2, 1, 0)).reshape(K, C1)           # (3, 32)
    eye = jnp.eye(L1, dtype=jnp.float32)
    w1m = (eye[None, :, :, None] * w1k[:, None, None, :]).reshape(K * L1, L1 * C1)
    b1t = jnp.tile(b1, L1).reshape(1, L1 * C1)

    # conv2 weight as banded (L2*C1, L2*C2): row j*C1+cin, col l*C2+cout = w2[cout,cin,j-l+1]
    w2k = jnp.transpose(w2, (2, 1, 0))                          # (3, 32, 64)
    zero_blk = jnp.zeros((C1, C2), jnp.float32)
    rows = []
    for j in range(L2):                                         # pooled input position
        cols = []
        for l in range(L2):                                     # conv2 output position
            k = j - l + 1
            cols.append(w2k[k] if 0 <= k < K else zero_blk)
        rows.append(jnp.concatenate(cols, axis=1))
    w2m = jnp.concatenate(rows, axis=0)                         # (128, 256)
    b2t = jnp.tile(b2, L2).reshape(1, L2 * C2)

    # fc1 weight permuted: kernel flat index l*C2+c  <->  PyTorch flat index c*L3+l
    perm = np.array([c * L3 + l for l in range(L3) for c in range(C2)], dtype=np.int32)
    wf1p = fw1.T[jnp.asarray(perm), :]                          # (128, 128)
    bf1t = fb1.reshape(1, HID)

    # fc2 zero-padded to a lane-dense 128-wide output slab
    wf2p = jnp.zeros((HID, NC_PAD), jnp.float32).at[:, :NUM_CLASSES].set(fw2.T)
    bf2p = jnp.zeros((1, NC_PAD), jnp.float32).at[:, :NUM_CLASSES].set(fb2[None, :])

    out = pl.pallas_call(
        cnn_kernel,
        out_shape=jax.ShapeDtypeStruct((b_pad, NC_PAD), jnp.float32),
        grid=(b_pad // tb,),
        in_specs=[
            pl.BlockSpec((tb, K * SEQ_LEN), lambda i: (i, 0)),      # im2col input
            pl.BlockSpec((K * L1, L1 * C1), lambda i: (0, 0)),      # conv1 weight
            pl.BlockSpec((1, L1 * C1), lambda i: (0, 0)),           # conv1 bias (tiled)
            pl.BlockSpec((L2 * C1, L2 * C2), lambda i: (0, 0)),     # conv2 weight (banded)
            pl.BlockSpec((1, L2 * C2), lambda i: (0, 0)),           # conv2 bias (tiled)
            pl.BlockSpec((HID, HID), lambda i: (0, 0)),             # fc1 weight (permuted)
            pl.BlockSpec((1, HID), lambda i: (0, 0)),               # fc1 bias
            pl.BlockSpec((HID, NC_PAD), lambda i: (0, 0)),          # fc2 weight (padded)
            pl.BlockSpec((1, NC_PAD), lambda i: (0, 0)),            # fc2 bias (padded)
        ],
        out_specs=pl.BlockSpec((tb, NC_PAD), lambda i: (i, 0)),
        compiler_params=pltpu.CompilerParams(
            dimension_semantics=("parallel",)),
    )(x1, w1m, b1t, w2m, b2t, wf1p, bf1t, wf2p, bf2p)
    return out[:B, :NUM_CLASSES]


def init_params(key):
    """Deterministic init matching the PyTorch parameter shapes."""
    ks = jax.random.split(key, 8)

    def u(k, shape, fan_in):
        bound = 1.0 / np.sqrt(fan_in)
        return jax.random.uniform(k, shape, jnp.float32, -bound, bound)

    w1 = u(ks[0], (C1, 1, 3), 1 * 3)          # Conv1d(1, 32, 3)
    b1 = u(ks[1], (C1,), 1 * 3)
    w2 = u(ks[2], (C2, C1, 3), C1 * 3)        # Conv1d(32, 64, 3)
    b2 = u(ks[3], (C2,), C1 * 3)
    fw1 = u(ks[4], (HID, C2 * 2), C2 * 2)     # Linear(128, 128)
    fb1 = u(ks[5], (HID,), C2 * 2)
    fw2 = u(ks[6], (NUM_CLASSES, HID), HID)   # Linear(128, num_classes)
    fb2 = u(ks[7], (NUM_CLASSES,), HID)
    return (w1, b1, w2, b2, fw1, fb1, fw2, fb2)


def ref_forward_np(x, params):
    """Pure-numpy reference with exact PyTorch (NCW) semantics."""
    w1, b1, w2, b2, fw1, fb1, fw2, fb2 = [np.asarray(p, np.float32) for p in params]
    x = np.asarray(x, np.float32)

    def conv1d(x, w, b):                      # x (B,Cin,L), w (Cout,Cin,3), pad=1
        B, Cin, L = x.shape
        Cout = w.shape[0]
        xp = np.pad(x, ((0, 0), (0, 0), (1, 1)))
        y = np.zeros((B, Cout, L), np.float32)
        for l in range(L):
            y[:, :, l] = np.einsum('bck,ock->bo', xp[:, :, l:l + 3], w) + b
        return y

    y = np.maximum(conv1d(x, w1, b1), 0.0)
    y = np.maximum(y[:, :, 0::2], y[:, :, 1::2])
    y = np.maximum(conv1d(y, w2, b2), 0.0)
    y = np.maximum(y[:, :, 0::2], y[:, :, 1::2])          # (B, 64, 2)
    flat = y.reshape(y.shape[0], -1)                      # (B, 128), channel-major
    h = np.maximum(flat @ fw1.T + fb1, 0.0)
    return h @ fw2.T + fb2


if __name__ == "__main__":
    key = jax.random.PRNGKey(0)
    kx, kp = jax.random.split(key)

    B = 2
    x = jax.random.normal(kx, (B, 1, SEQ_LEN), jnp.float32)   # PyTorch NCW input
    params = init_params(kp)

    out = cnn_forward(x, params)
    out = jax.block_until_ready(out)

    ref = ref_forward_np(x, params)
    np.testing.assert_allclose(np.asarray(out), ref, rtol=1e-3, atol=1e-3)

    print("KERNEL_OK")
</pallas_src>

<mosaic_0001>
module attributes {stable_mosaic.version = 11 : i64} {
  func.func @cnn_kernel(%arg0: i32, %arg1: memref<8x24xf32, #tpu.memory_space<vmem>>, %arg2: memref<24x256xf32, #tpu.memory_space<vmem>>, %arg3: memref<1x256xf32, #tpu.memory_space<vmem>>, %arg4: memref<128x256xf32, #tpu.memory_space<vmem>>, %arg5: memref<1x256xf32, #tpu.memory_space<vmem>>, %arg6: memref<128x128xf32, #tpu.memory_space<vmem>>, %arg7: memref<1x128xf32, #tpu.memory_space<vmem>>, %arg8: memref<128x128xf32, #tpu.memory_space<vmem>>, %arg9: memref<1x128xf32, #tpu.memory_space<vmem>>, %arg10: memref<8x128xf32, #tpu.memory_space<vmem>>) attributes {dimension_semantics = [#tpu.dimension_semantics<parallel>], iteration_bounds = array<i64: 1>, scalar_prefetch = 0 : i64, scratch_operands = 0 : i64, tpu.core_type = #tpu.core_type<tc>, window_params = [{transform_indices = @transform_0, window_bounds = array<i64: 8, 24>}, {pipeline_mode = #tpu.pipeline_mode<synchronous>, transform_indices = @transform_1, window_bounds = array<i64: 24, 256>}, {pipeline_mode = #tpu.pipeline_mode<synchronous>, transform_indices = @transform_2, window_bounds = array<i64: 1, 256>}, {pipeline_mode = #tpu.pipeline_mode<synchronous>, transform_indices = @transform_3, window_bounds = array<i64: 128, 256>}, {pipeline_mode = #tpu.pipeline_mode<synchronous>, transform_indices = @transform_4, window_bounds = array<i64: 1, 256>}, {pipeline_mode = #tpu.pipeline_mode<synchronous>, transform_indices = @transform_5, window_bounds = array<i64: 128, 128>}, {pipeline_mode = #tpu.pipeline_mode<synchronous>, transform_indices = @transform_6, window_bounds = array<i64: 1, 128>}, {pipeline_mode = #tpu.pipeline_mode<synchronous>, transform_indices = @transform_7, window_bounds = array<i64: 128, 128>}, {pipeline_mode = #tpu.pipeline_mode<synchronous>, transform_indices = @transform_8, window_bounds = array<i64: 1, 128>}, {transform_indices = @transform_9, window_bounds = array<i64: 8, 128>}]} {
    %c0 = arith.constant 0 : index
    %c0_0 = arith.constant 0 : index
    %0 = vector.load %arg1[%c0, %c0_0] : memref<8x24xf32, #tpu.memory_space<vmem>>, vector<8x24xf32>
    %c0_1 = arith.constant 0 : index
    %c0_2 = arith.constant 0 : index
    %1 = vector.load %arg2[%c0_1, %c0_2] : memref<24x256xf32, #tpu.memory_space<vmem>>, vector<24x256xf32>
    %cst = arith.constant dense<0.000000e+00> : vector<8x256xf32>
    %2 = tpu.matmul %0, %1, %cst {dimension_numbers = #tpu.dot_dimension_numbers<[1], [0], [0], [1], [0, 0, 1, 1], [], []>} : vector<8x24xf32>, vector<24x256xf32>, vector<8x256xf32> -> vector<8x256xf32>
    %c0_3 = arith.constant 0 : index
    %c0_4 = arith.constant 0 : index
    %3 = vector.load %arg3[%c0_3, %c0_4] : memref<1x256xf32, #tpu.memory_space<vmem>>, vector<1x256xf32>
    %4 = vector.broadcast %3 : vector<1x256xf32> to vector<8x256xf32>
    %5 = arith.addf %2, %4 : vector<8x256xf32>
    %cst_5 = arith.constant 0.000000e+00 : f32
    %6 = vector.broadcast %cst_5 : f32 to vector<8x256xf32>
    %7 = arith.maximumf %5, %6 : vector<8x256xf32>
    %8 = vector.extract_strided_slice %7 {offsets = [0, 0], sizes = [8, 32], strides = [1, 1]} : vector<8x256xf32> to vector<8x32xf32>
    %9 = vector.extract_strided_slice %7 {offsets = [0, 32], sizes = [8, 32], strides = [1, 1]} : vector<8x256xf32> to vector<8x32xf32>
    %10 = arith.maximumf %8, %9 : vector<8x32xf32>
    %11 = vector.extract_strided_slice %7 {offsets = [0, 64], sizes = [8, 32], strides = [1, 1]} : vector<8x256xf32> to vector<8x32xf32>
    %12 = vector.extract_strided_slice %7 {offsets = [0, 96], sizes = [8, 32], strides = [1, 1]} : vector<8x256xf32> to vector<8x32xf32>
    %13 = arith.maximumf %11, %12 : vector<8x32xf32>
    %14 = vector.extract_strided_slice %7 {offsets = [0, 128], sizes = [8, 32], strides = [1, 1]} : vector<8x256xf32> to vector<8x32xf32>
    %15 = vector.extract_strided_slice %7 {offsets = [0, 160], sizes = [8, 32], strides = [1, 1]} : vector<8x256xf32> to vector<8x32xf32>
    %16 = arith.maximumf %14, %15 : vector<8x32xf32>
    %17 = vector.extract_strided_slice %7 {offsets = [0, 192], sizes = [8, 32], strides = [1, 1]} : vector<8x256xf32> to vector<8x32xf32>
    %18 = vector.extract_strided_slice %7 {offsets = [0, 224], sizes = [8, 32], strides = [1, 1]} : vector<8x256xf32> to vector<8x32xf32>
    %19 = arith.maximumf %17, %18 : vector<8x32xf32>
    %20 = tpu.concatenate %10, %13, %16, %19 in 1 : vector<8x32xf32>, vector<8x32xf32>, vector<8x32xf32>, vector<8x32xf32> -> vector<8x128xf32>
    %c0_6 = arith.constant 0 : index
    %c0_7 = arith.constant 0 : index
    %21 = vector.load %arg4[%c0_6, %c0_7] : memref<128x256xf32, #tpu.memory_space<vmem>>, vector<128x256xf32>
    %cst_8 = arith.constant dense<0.000000e+00> : vector<8x256xf32>
    %22 = tpu.matmul %20, %21, %cst_8 {dimension_numbers = #tpu.dot_dimension_numbers<[1], [0], [0], [1], [0, 0, 1, 1], [], []>} : vector<8x128xf32>, vector<128x256xf32>, vector<8x256xf32> -> vector<8x256xf32>
    %c0_9 = arith.constant 0 : index
    %c0_10 = arith.constant 0 : index
    %23 = vector.load %arg5[%c0_9, %c0_10] : memref<1x256xf32, #tpu.memory_space<vmem>>, vector<1x256xf32>
    %24 = vector.broadcast %23 : vector<1x256xf32> to vector<8x256xf32>
    %25 = arith.addf %22, %24 : vector<8x256xf32>
    %cst_11 = arith.constant 0.000000e+00 : f32
    %26 = vector.broadcast %cst_11 : f32 to vector<8x256xf32>
    %27 = arith.maximumf %25, %26 : vector<8x256xf32>
    %28 = vector.extract_strided_slice %27 {offsets = [0, 0], sizes = [8, 64], strides = [1, 1]} : vector<8x256xf32> to vector<8x64xf32>
    %29 = vector.extract_strided_slice %27 {offsets = [0, 64], sizes = [8, 64], strides = [1, 1]} : vector<8x256xf32> to vector<8x64xf32>
    %30 = arith.maximumf %28, %29 : vector<8x64xf32>
    %31 = vector.extract_strided_slice %27 {offsets = [0, 128], sizes = [8, 64], strides = [1, 1]} : vector<8x256xf32> to vector<8x64xf32>
    %32 = vector.extract_strided_slice %27 {offsets = [0, 192], sizes = [8, 64], strides = [1, 1]} : vector<8x256xf32> to vector<8x64xf32>
    %33 = arith.maximumf %31, %32 : vector<8x64xf32>
    %34 = tpu.concatenate %30, %33 in 1 : vector<8x64xf32>, vector<8x64xf32> -> vector<8x128xf32>
    %c0_12 = arith.constant 0 : index
    %c0_13 = arith.constant 0 : index
    %35 = vector.load %arg6[%c0_12, %c0_13] : memref<128x128xf32, #tpu.memory_space<vmem>>, vector<128x128xf32>
    %cst_14 = arith.constant dense<0.000000e+00> : vector<8x128xf32>
    %36 = tpu.matmul %34, %35, %cst_14 {dimension_numbers = #tpu.dot_dimension_numbers<[1], [0], [0], [1], [0, 0, 1, 1], [], []>} : vector<8x128xf32>, vector<128x128xf32>, vector<8x128xf32> -> vector<8x128xf32>
    %c0_15 = arith.constant 0 : index
    %c0_16 = arith.constant 0 : index
    %37 = vector.load %arg7[%c0_15, %c0_16] : memref<1x128xf32, #tpu.memory_space<vmem>>, vector<1x128xf32>
    %38 = vector.broadcast %37 : vector<1x128xf32> to vector<8x128xf32>
    %39 = arith.addf %36, %38 : vector<8x128xf32>
    %cst_17 = arith.constant 0.000000e+00 : f32
    %40 = vector.broadcast %cst_17 : f32 to vector<8x128xf32>
    %41 = arith.maximumf %39, %40 : vector<8x128xf32>
    %c0_18 = arith.constant 0 : index
    %c0_19 = arith.constant 0 : index
    %42 = vector.load %arg8[%c0_18, %c0_19] : memref<128x128xf32, #tpu.memory_space<vmem>>, vector<128x128xf32>
    %cst_20 = arith.constant dense<0.000000e+00> : vector<8x128xf32>
    %43 = tpu.matmul %41, %42, %cst_20 {dimension_numbers = #tpu.dot_dimension_numbers<[1], [0], [0], [1], [0, 0, 1, 1], [], []>} : vector<8x128xf32>, vector<128x128xf32>, vector<8x128xf32> -> vector<8x128xf32>
    %c0_21 = arith.constant 0 : index
    %c0_22 = arith.constant 0 : index
    %44 = vector.load %arg9[%c0_21, %c0_22] : memref<1x128xf32, #tpu.memory_space<vmem>>, vector<1x128xf32>
    %45 = vector.broadcast %44 : vector<1x128xf32> to vector<8x128xf32>
    %46 = arith.addf %43, %45 : vector<8x128xf32>
    %c0_23 = arith.constant 0 : index
    %c0_24 = arith.constant 0 : index
    %47 = vector.load %arg10[%c0_23, %c0_24] : memref<8x128xf32, #tpu.memory_space<vmem>>, vector<8x128xf32>
    tpu.vector_store %arg10[%c0_23, %c0_24], %46 {strides = array<i32>} : memref<8x128xf32, #tpu.memory_space<vmem>>, vector<8x128xf32>,
    return
  }
  func.func @transform_0(%arg0: i32) -> (i32, i32) {
    %c0_i32 = arith.constant 0 : i32
    %c0_i32_0 = arith.constant 0 : i32
    return %arg0, %c0_i32 : i32, i32
  }
  func.func @transform_1(%arg0: i32) -> (i32, i32) {
    %c0_i32 = arith.constant 0 : i32
    %c0_i32_0 = arith.constant 0 : i32
    %c0_i32_1 = arith.constant 0 : i32
    return %c0_i32, %c0_i32_0 : i32, i32
  }
  func.func @transform_2(%arg0: i32) -> (i32, i32) {
    %c0_i32 = arith.constant 0 : i32
    %c0_i32_0 = arith.constant 0 : i32
    %c0_i32_1 = arith.constant 0 : i32
    return %c0_i32, %c0_i32_0 : i32, i32
  }
  func.func @transform_3(%arg0: i32) -> (i32, i32) {
    %c0_i32 = arith.constant 0 : i32
    %c0_i32_0 = arith.constant 0 : i32
    %c0_i32_1 = arith.constant 0 : i32
    return %c0_i32, %c0_i32_0 : i32, i32
  }
  func.func @transform_4(%arg0: i32) -> (i32, i32) {
    %c0_i32 = arith.constant 0 : i32
    %c0_i32_0 = arith.constant 0 : i32
    %c0_i32_1 = arith.constant 0 : i32
    return %c0_i32, %c0_i32_0 : i32, i32
  }
  func.func @transform_5(%arg0: i32) -> (i32, i32) {
    %c0_i32 = arith.constant 0 : i32
    %c0_i32_0 = arith.constant 0 : i32
    %c0_i32_1 = arith.constant 0 : i32
    return %c0_i32, %c0_i32_0 : i32, i32
  }
  func.func @transform_6(%arg0: i32) -> (i32, i32) {
    %c0_i32 = arith.constant 0 : i32
    %c0_i32_0 = arith.constant 0 : i32
    %c0_i32_1 = arith.constant 0 : i32
    return %c0_i32, %c0_i32_0 : i32, i32
  }
  func.func @transform_7(%arg0: i32) -> (i32, i32) {
    %c0_i32 = arith.constant 0 : i32
    %c0_i32_0 = arith.constant 0 : i32
    %c0_i32_1 = arith.constant 0 : i32
    return %c0_i32, %c0_i32_0 : i32, i32
  }
  func.func @transform_8(%arg0: i32) -> (i32, i32) {
    %c0_i32 = arith.constant 0 : i32
    %c0_i32_0 = arith.constant 0 : i32
    %c0_i32_1 = arith.constant 0 : i32
    return %c0_i32, %c0_i32_0 : i32, i32
  }
  func.func @transform_9(%arg0: i32) -> (i32, i32) {
    %c0_i32 = arith.constant 0 : i32
    %c0_i32_0 = arith.constant 0 : i32
    return %arg0, %c0_i32 : i32, i32
  }
}

</mosaic_0001>

<llo_original>
// kernel: tpu_custom_call.1
$region0: #{tpu_custom_call.1}
  #allocation0 [shape = 'u32[]', space=smem, size = 0x4, offset = 0x4, fixed_abs, tag = 'smem constant byte address 0x4 - core index']
  #allocation1 [shape = 'u32[144,128]{1,0:T(1,128)}', space=vmem, size = 0x12000, scoped, tag = 'internal scratch']
  %s0 = inlined_call_operand.hbm [shape: f32[8,24], index: 0, kind: input, shape index: {}]
  %s1 = inlined_call_operand.hbm [shape: f32[24,256], index: 1, kind: input, shape index: {}]
  %s2 = inlined_call_operand.vmem [shape: f32[1,256], index: 2, kind: input, shape index: {}]
  %s3 = inlined_call_operand.hbm [shape: f32[128,256], index: 3, kind: input, shape index: {}]
  %s4 = inlined_call_operand.vmem [shape: f32[1,256], index: 4, kind: input, shape index: {}]
  %s5 = inlined_call_operand.hbm [shape: f32[128,128], index: 5, kind: input, shape index: {}]
  %s6 = inlined_call_operand.vmem [shape: f32[1,128], index: 6, kind: input, shape index: {}]
  %s7 = inlined_call_operand.hbm [shape: f32[128,128], index: 7, kind: input, shape index: {}]
  %s8 = inlined_call_operand.vmem [shape: f32[1,128], index: 8, kind: input, shape index: {}]
  %s9 = inlined_call_operand.hbm [shape: f32[8,128], index: 9, kind: output, shape index: {}]
  %s10 = sld [smem:[#allocation0]]
  $region66: #{tpu_custom_call.1} parent=0
    _
  %s12 = ssub.s32 1, %s10
  %s13 = scalar_select 0, %s12, %s10
  $region1: #{tpu_custom_call.1} parent=0
    #allocation2 [shape = 'u8[4096]{0}', space=vmem, size = 0x1000, scoped, tag = 'input window, operand 0, single buffered']
    #allocation3 [shape = 's32[1]{0}', space=sflag, size = 0x4, scoped, tag = 'scoped memory for tpu_custom_call.1']
    #allocation4 [shape = 's32[1]{0}', space=sflag, size = 0x4, scoped, tag = 'scoped memory for tpu_custom_call.1']
    #allocation5 [shape = 'u8[24576]{0}', space=vmem, size = 0x6000, scoped, tag = 'input window, operand 1, single buffered']
    #allocation6 [shape = 's32[1]{0}', space=sflag, size = 0x4, scoped, tag = 'scoped memory for tpu_custom_call.1']
    #allocation7 [shape = 'u8[131072]{0}', space=vmem, size = 0x20000, scoped, tag = 'input window, operand 3, single buffered']
    #allocation8 [shape = 'u8[65536]{0}', space=vmem, size = 0x10000, scoped, tag = 'input window, operand 5, single buffered']
    #allocation9 [shape = 's32[1]{0}', space=sflag, size = 0x4, scoped, tag = 'scoped memory for tpu_custom_call.1']
    #allocation10 [shape = 'u8[65536]{0}', space=vmem, size = 0x10000, scoped, tag = 'input window, operand 7, single buffered']
    #allocation11 [shape = 'u8[4096]{0}', space=vmem, size = 0x1000, scoped, tag = 'output window, operand 0, single buffered']
    %14 = vsyncpa [#allocation3], 0
    %15 = vsyncpa [#allocation6], 0
    %16 = vsyncpa [#allocation9], 0
    %17 = vsyncpa [#allocation4], 0
    // Predicated region
    $region2: #{tpu_custom_call.1} parent=1 // pred_check
      _
    $region3: #{tpu_custom_call.1} parent=1 // pred_check_branch
      %19 = sbr.rel (0) target = $region5
    $region4: #{tpu_custom_call.1} parent=1 // pred_region
      %s21 = ssub.s32 128, 128
      %22 = vsyncadd [#allocation3], %s21
      %s24 = sshll.u32 [#allocation2], 4
      %s25 = int_to_ptr.vmem [resolvable:$true] %s24
      %27 = dma.hbm_to_vmem [thread:$0]  %s0, 128, %s25, [#allocation3]
    $region5: #{tpu_custom_call.1} parent=1 // pred_fallthru
      _
    // Predicated region
    $region6: #{tpu_custom_call.1} parent=1 // pred_check
      _
    $region7: #{tpu_custom_call.1} parent=1 // pred_check_branch
      %29 = sbr.rel (0) target = $region9
    $region8: #{tpu_custom_call.1} parent=1 // pred_region
      %s31 = ssub.s32 768, 768
      %32 = vsyncadd [#allocation6], %s31
      %s33 = sshll.u32 [#allocation5], 4
      %s34 = int_to_ptr.vmem [resolvable:$true] %s33
      %39 = dma.hbm_to_vmem [thread:$0]  %s1, 768, %s34, [#allocation6], 256, 256, 16
    $region9: #{tpu_custom_call.1} parent=1 // pred_fallthru
      _
    // Predicated region
    $region10: #{tpu_custom_call.1} parent=1 // pred_check
      _
    $region11: #{tpu_custom_call.1} parent=1 // pred_check_branch
      %41 = sbr.rel (0) target = $region13
    $region12: #{tpu_custom_call.1} parent=1 // pred_region
      _
    $region13: #{tpu_custom_call.1} parent=1 // pred_fallthru
      _
    // Predicated region
    $region14: #{tpu_custom_call.1} parent=1 // pred_check
      _
    $region15: #{tpu_custom_call.1} parent=1 // pred_check_branch
      %43 = sbr.rel (0) target = $region17
    $region16: #{tpu_custom_call.1} parent=1 // pred_region
      %s45 = ssub.s32 4096, 4096
      %46 = vsyncadd [#allocation6], %s45
      %s47 = sshll.u32 [#allocation7], 4
      %s48 = int_to_ptr.vmem [resolvable:$true] %s47
      %53 = dma.hbm_to_vmem [thread:$0]  %s3, 4096, %s48, [#allocation6], 256, 256, 16
    $region17: #{tpu_custom_call.1} parent=1 // pred_fallthru
      _
    // Predicated region
    $region18: #{tpu_custom_call.1} parent=1 // pred_check
      _
    $region19: #{tpu_custom_call.1} parent=1 // pred_check_branch
      %55 = sbr.rel (0) target = $region21
    $region20: #{tpu_custom_call.1} parent=1 // pred_region
      _
    $region21: #{tpu_custom_call.1} parent=1 // pred_fallthru
      _
    // Predicated region
    $region22: #{tpu_custom_call.1} parent=1 // pred_check
      _
    $region23: #{tpu_custom_call.1} parent=1 // pred_check_branch
      %57 = sbr.rel (0) target = $region25
    $region24: #{tpu_custom_call.1} parent=1 // pred_region
      %s59 = ssub.s32 2048, 2048
      %60 = vsyncadd [#allocation9], %s59
      %s61 = sshll.u32 [#allocation8], 4
      %s62 = int_to_ptr.vmem [resolvable:$true] %s61
      %67 = dma.hbm_to_vmem [thread:$0]  %s5, 2048, %s62, [#allocation9], 128, 128, 8
    $region25: #{tpu_custom_call.1} parent=1 // pred_fallthru
      _
    // Predicated region
    $region26: #{tpu_custom_call.1} parent=1 // pred_check
      _
    $region27: #{tpu_custom_call.1} parent=1 // pred_check_branch
      %69 = sbr.rel (0) target = $region29
    $region28: #{tpu_custom_call.1} parent=1 // pred_region
      _
    $region29: #{tpu_custom_call.1} parent=1 // pred_fallthru
      _
    // Predicated region
    $region30: #{tpu_custom_call.1} parent=1 // pred_check
      _
    $region31: #{tpu_custom_call.1} parent=1 // pred_check_branch
      %71 = sbr.rel (0) target = $region33
    $region32: #{tpu_custom_call.1} parent=1 // pred_region
      %s73 = ssub.s32 2048, 2048
      %74 = vsyncadd [#allocation9], %s73
      %s75 = sshll.u32 [#allocation10], 4
      %s76 = int_to_ptr.vmem [resolvable:$true] %s75
      %81 = dma.hbm_to_vmem [thread:$0]  %s7, 2048, %s76, [#allocation9], 128, 128, 8
    $region33: #{tpu_custom_call.1} parent=1 // pred_fallthru
      _
    // Predicated region
    $region34: #{tpu_custom_call.1} parent=1 // pred_check
      _
    $region35: #{tpu_custom_call.1} parent=1 // pred_check_branch
      %83 = sbr.rel (0) target = $region37
    $region36: #{tpu_custom_call.1} parent=1 // pred_region
      _
    $region37: #{tpu_custom_call.1} parent=1 // pred_fallthru
      _
    // Predicated region
    $region38: #{tpu_custom_call.1} parent=1 // pred_check
      _
    $region39: #{tpu_custom_call.1} parent=1 // pred_check_branch
      %85 = sbr.rel (0) target = $region41
    $region40: #{tpu_custom_call.1} parent=1 // pred_region
      %86 = dma.done [#allocation3], 128
    $region41: #{tpu_custom_call.1} parent=1 // pred_fallthru
      _
    // Predicated region
    $region42: #{tpu_custom_call.1} parent=1 // pred_check
      _
    $region43: #{tpu_custom_call.1} parent=1 // pred_check_branch
      %88 = sbr.rel (0) target = $region45
    $region44: #{tpu_custom_call.1} parent=1 // pred_region
      %89 = dma.done [#allocation6], 768
    $region45: #{tpu_custom_call.1} parent=1 // pred_fallthru
      _
    // Predicated region
    $region46: #{tpu_custom_call.1} parent=1 // pred_check
      _
    $region47: #{tpu_custom_call.1} parent=1 // pred_check_branch
      %91 = sbr.rel (0) target = $region49
    $region48: #{tpu_custom_call.1} parent=1 // pred_region
      %92 = dma.done [#allocation6], 4096
    $region49: #{tpu_custom_call.1} parent=1 // pred_fallthru
      _
    // Predicated region
    $region50: #{tpu_custom_call.1} parent=1 // pred_check
      _
    $region51: #{tpu_custom_call.1} parent=1 // pred_check_branch
      %94 = sbr.rel (0) target = $region53
    $region52: #{tpu_custom_call.1} parent=1 // pred_region
      %95 = dma.done [#allocation9], 2048
    $region53: #{tpu_custom_call.1} parent=1 // pred_fallthru
      _
    // Predicated region
    $region54: #{tpu_custom_call.1} parent=1 // pred_check
      _
    $region55: #{tpu_custom_call.1} parent=1 // pred_check_branch
      %97 = sbr.rel (0) target = $region57
    $region56: #{tpu_custom_call.1} parent=1 // pred_region
      %98 = dma.done [#allocation9], 2048
    $region57: #{tpu_custom_call.1} parent=1 // pred_fallthru
      _
    %v99 = vld [vmem:[#allocation2] sm:$0xff]
    %v100 = vld [vmem:[#allocation5] sm:$0xff]
    %v101 = vld [vmem:[#allocation5 + $0x8] sm:$0xff]
    %v102 = vld [vmem:[#allocation5 + $0x10] sm:$0xff]
    %v103 = vld [vmem:[#allocation5 + $0x18] sm:$0xff]
    %v104 = vld [vmem:[#allocation5 + $0x20] sm:$0xff]
    %v105 = vld [vmem:[#allocation5 + $0x28] sm:$0xff]
    %v106 = vld [vmem:[%s2] sm:$0x3]
    %v108 = vlaneseq
    %v109 = vshrl.u32 %v108, 7
    %v110 = vsub.s32 0, %v109
    %v111 = vrot.slane %v106, %v110
    %v112 = vlaneseq
    %v113 = vshrl.u32 %v112, 7
    %v114 = vsub.s32 1, %v113
    %v115 = vrot.slane %v106, %v114
    %vm118 = vcmask 195584
    %v120 = vsel %vm118, %v99, 0
    %122 = vmatprep.subr.mxu0 %v101
    %123 = vmatpush1.msra.mxu0 %v100
    %124 = vmatprep.subr.mxu0 %v103
    %125 = vmatpush1.msra.mxu0 %v102
    %126 = vmatprep.subr.mxu0 %v105
    %127 = vmatpush1.msra.mxu0 %v104
    %128 = vmatprep.subr.mxu0 0.0
    %129 = vmatpush1.msra.mxu0 0.0
    %130 = vmatprep.subr.mxu0 0.0
    %131 = vmatpush1.msra.mxu0 0.0
    %132 = vmatprep.subr.mxu0 0.0
    %133 = vmatpush1.msra.mxu0 0.0
    %134 = vmatprep.subr.mxu0 0.0
    %135 = vmatpush1.msra.mxu0 0.0
    %136 = vmatprep.subr.mxu0 0.0
    %137 = vmatpush1.msra.mxu0 0.0
    %138 = vmatprep.subr.mxu0 0.0
    %139 = vmatpush1.msra.mxu0 0.0
    %140 = vmatprep.subr.mxu0 0.0
    %141 = vmatpush1.msra.mxu0 0.0
    %142 = vmatprep.subr.mxu0 0.0
    %143 = vmatpush1.msra.mxu0 0.0
    %144 = vmatprep.subr.mxu0 0.0
    %145 = vmatpush1.msra.mxu0 0.0
    %146 = vmatprep.subr.mxu0 0.0
    %147 = vmatpush1.msra.mxu0 0.0
    %148 = vmatprep.subr.mxu0 0.0
    %149 = vmatpush1.msra.mxu0 0.0
    %150 = vmatprep.subr.mxu0 0.0
    %151 = vmatpush1.msra.mxu0 0.0
    %152 = vmatprep.subr.mxu0 0.0
    %153 = vmatpush1.msra.mxu0 0.0
    %154 = vmatprep.subr.mxu0 0.0
    %155 = vmatpush1.msra.mxu0 0.0
    %156 = vmatprep.subr.mxu0 0.0
    %157 = vmatpush1.msra.mxu0 0.0
    %158 = vmatprep.subr.mxu0 0.0
    %159 = vmatpush1.msra.mxu0 0.0
    %160 = vmatprep.subr.mxu0 0.0
    %161 = vmatpush1.msra.mxu0 0.0
    %162 = vmatprep.subr.mxu0 0.0
    %163 = vmatpush1.msra.mxu0 0.0
    %164 = vmatprep.subr.mxu0 0.0
    %165 = vmatpush1.msra.mxu0 0.0
    %166 = vmatprep.subr.mxu0 0.0
    %167 = vmatpush1.msra.mxu0 0.0
    %168 = vmatprep.subr.mxu0 0.0
    %169 = vmatpush1.msra.mxu0 0.0
    %170 = vmatprep.subr.mxu0 0.0
    %171 = vmatpush1.msra.mxu0 0.0
    %172 = vmatprep.subr.mxu0 0.0
    %173 = vmatpush1.msra.mxu0 0.0
    %174 = vmatprep.subr.mxu0 0.0
    %175 = vmatpush1.msra.mxu0 0.0
    %176 = vmatprep.subr.mxu0 0.0
    %177 = vmatpush1.msra.mxu0 0.0
    %178 = vmatprep.subr.mxu0 0.0
    %179 = vmatpush1.msra.mxu0 0.0
    %180 = vmatprep.subr.mxu0 0.0
    %181 = vmatpush1.msra.mxu0 0.0
    %182 = vmatprep.subr.mxu0 0.0
    %183 = vmatpush1.msra.mxu0 0.0
    %184 = vmatprep.subr.mxu0 0.0
    %185 = vmatpush1.msra.mxu0 0.0
    %186 = vmatprep.mubr.f32.mxu0 0.0
    %187 = vmatmul.mubr.f32.gmra.mrb[0].mxu0 %v120
    %v188 = vpop.f32.mrb[0].mxu0
    %v189 = vadd.f32 %v111, %v188
    %v190 = vpop.f32.mrb[0].mxu0
    %v191 = vadd.f32 %v115, %v190
    %192 = vdwg.mxu0
    %v193 = vmax.f32 %v189, 0.0
    %v194 = vmax.f32 %v191, 0.0
    %196 = vrot.lane.b32.xlu0 %v193, 96
    %v197 = vpop.permute.xlu0 %196
    %v199 = vmax.f32 %v193, %v197
    %201 = vrot.lane.b32.xlu0 %v194, 96
    %v202 = vpop.permute.xlu0 %201
    %v204 = vmax.f32 %v194, %v202
    %206 = vrot.lane.b32.xlu0 %v199, 96
    %v207 = vpop.permute.xlu0 %206
    %210 = vrot.lane.b32.xlu0 %v204, 64
    %v211 = vpop.permute.xlu0 %210
    %213 = vrot.lane.b32.xlu0 %v204, 32
    %v214 = vpop.permute.xlu0 %213
    %vm216 = vcmask 261120
    %v217 = vsel %vm216, %v199, %v207
    %vm218 = vcmask 523264
    %v219 = vsel %vm218, %v217, %v211
    %vm220 = vcmask 785408
    %v221 = vsel %vm220, %v219, %v214
    %v222 = vld [vmem:[#allocation7] sm:$0xff]
    %v223 = vld [vmem:[#allocation7 + $0x8] sm:$0xff]
    %v224 = vld [vmem:[#allocation7 + $0x10] sm:$0xff]
    %v225 = vld [vmem:[#allocation7 + $0x18] sm:$0xff]
    %v226 = vld [vmem:[#allocation7 + $0x20] sm:$0xff]
    %v227 = vld [vmem:[#allocation7 + $0x28] sm:$0xff]
    %v228 = vld [vmem:[#allocation7 + $0x30] sm:$0xff]
    %v229 = vld [vmem:[#allocation7 + $0x38] sm:$0xff]
    %v230 = vld [vmem:[#allocation7 + $0x40] sm:$0xff]
    %v231 = vld [vmem:[#allocation7 + $0x48] sm:$0xff]
    %v232 = vld [vmem:[#allocation7 + $0x50] sm:$0xff]
    %v233 = vld [vmem:[#allocation7 + $0x58] sm:$0xff]
    %v234 = vld [vmem:[#allocation7 + $0x60] sm:$0xff]
    %v235 = vld [vmem:[#allocation7 + $0x68] sm:$0xff]
    %v236 = vld [vmem:[#allocation7 + $0x70] sm:$0xff]
    %v237 = vld [vmem:[#allocation7 + $0x78] sm:$0xff]
    %v238 = vld [vmem:[#allocation7 + $0x80] sm:$0xff]
    %v239 = vld [vmem:[#allocation7 + $0x88] sm:$0xff]
    %v240 = vld [vmem:[#allocation7 + $0x90] sm:$0xff]
    %v241 = vld [vmem:[#allocation7 + $0x98] sm:$0xff]
    %v242 = vld [vmem:[#allocation7 + $0xa0] sm:$0xff]
    %v243 = vld [vmem:[#allocation7 + $0xa8] sm:$0xff]
    %v244 = vld [vmem:[#allocation7 + $0xb0] sm:$0xff]
    %v245 = vld [vmem:[#allocation7 + $0xb8] sm:$0xff]
    %v246 = vld [vmem:[#allocation7 + $0xc0] sm:$0xff]
    %v247 = vld [vmem:[#allocation7 + $0xc8] sm:$0xff]
    %v248 = vld [vmem:[#allocation7 + $0xd0] sm:$0xff]
    %v249 = vld [vmem:[#allocation7 + $0xd8] sm:$0xff]
    %v250 = vld [vmem:[#allocation7 + $0xe0] sm:$0xff]
    %v251 = vld [vmem:[#allocation7 + $0xe8] sm:$0xff]
    %v252 = vld [vmem:[#allocation7 + $0xf0] sm:$0xff]
    %v253 = vld [vmem:[#allocation7 + $0xf8] sm:$0xff]
    %v254 = vld [vmem:[%s4] sm:$0x3]
    %v256 = vlaneseq
    %v257 = vshrl.u32 %v256, 7
    %v258 = vsub.s32 0, %v257
    %v259 = vrot.slane %v254, %v258
    %v260 = vlaneseq
    %v261 = vshrl.u32 %v260, 7
    %v262 = vsub.s32 1, %v261
    %v263 = vrot.slane %v254, %v262
    %266 = vmatprep.subr.mxu0 %v223
    %267 = vmatpush1.msra.mxu0 %v222
    %268 = vmatprep.subr.mxu0 %v225
    %269 = vmatpush1.msra.mxu0 %v224
    %270 = vmatprep.subr.mxu0 %v227
    %271 = vmatpush1.msra.mxu0 %v226
    %272 = vmatprep.subr.mxu0 %v229
    %273 = vmatpush1.msra.mxu0 %v228
    %274 = vmatprep.subr.mxu0 %v231
    %275 = vmatpush1.msra.mxu0 %v230
    %276 = vmatprep.subr.mxu0 %v233
    %277 = vmatpush1.msra.mxu0 %v232
    %278 = vmatprep.subr.mxu0 %v235
    %279 = vmatpush1.msra.mxu0 %v234
    %280 = vmatprep.subr.mxu0 %v237
    %281 = vmatpush1.msra.mxu0 %v236
    %282 = vmatprep.subr.mxu0 %v239
    %283 = vmatpush1.msra.mxu0 %v238
    %284 = vmatprep.subr.mxu0 %v241
    %285 = vmatpush1.msra.mxu0 %v240
    %286 = vmatprep.subr.mxu0 %v243
    %287 = vmatpush1.msra.mxu0 %v242
    %288 = vmatprep.subr.mxu0 %v245
    %289 = vmatpush1.msra.mxu0 %v244
    %290 = vmatprep.subr.mxu0 %v247
    %291 = vmatpush1.msra.mxu0 %v246
    %292 = vmatprep.subr.mxu0 %v249
    %293 = vmatpush1.msra.mxu0 %v248
    %294 = vmatprep.subr.mxu0 %v251
    %295 = vmatpush1.msra.mxu0 %v250
    %296 = vmatprep.subr.mxu0 %v253
    %297 = vmatpush1.msra.mxu0 %v252
    %298 = vmatprep.subr.mxu0 0.0
    %299 = vmatpush1.msra.mxu0 0.0
    %300 = vmatprep.subr.mxu0 0.0
    %301 = vmatpush1.msra.mxu0 0.0
    %302 = vmatprep.subr.mxu0 0.0
    %303 = vmatpush1.msra.mxu0 0.0
    %304 = vmatprep.subr.mxu0 0.0
    %305 = vmatpush1.msra.mxu0 0.0
    %306 = vmatprep.subr.mxu0 0.0
    %307 = vmatpush1.msra.mxu0 0.0
    %308 = vmatprep.subr.mxu0 0.0
    %309 = vmatpush1.msra.mxu0 0.0
    %310 = vmatprep.subr.mxu0 0.0
    %311 = vmatpush1.msra.mxu0 0.0
    %312 = vmatprep.subr.mxu0 0.0
    %313 = vmatpush1.msra.mxu0 0.0
    %314 = vmatprep.subr.mxu0 0.0
    %315 = vmatpush1.msra.mxu0 0.0
    %316 = vmatprep.subr.mxu0 0.0
    %317 = vmatpush1.msra.mxu0 0.0
    %318 = vmatprep.subr.mxu0 0.0
    %319 = vmatpush1.msra.mxu0 0.0
    %320 = vmatprep.subr.mxu0 0.0
    %321 = vmatpush1.msra.mxu0 0.0
    %322 = vmatprep.subr.mxu0 0.0
    %323 = vmatpush1.msra.mxu0 0.0
    %324 = vmatprep.subr.mxu0 0.0
    %325 = vmatpush1.msra.mxu0 0.0
    %326 = vmatprep.subr.mxu0 0.0
    %327 = vmatpush1.msra.mxu0 0.0
    %328 = vmatprep.subr.mxu0 0.0
    %329 = vmatpush1.msra.mxu0 0.0
    %330 = vmatprep.mubr.f32.mxu0 0.0
    %331 = vmatmul.mubr.f32.gmra.mrb[0].mxu0 %v221
    %v332 = vpop.f32.mrb[0].mxu0
    %v333 = vadd.f32 %v259, %v332
    %v334 = vpop.f32.mrb[0].mxu0
    %v335 = vadd.f32 %v263, %v334
    %336 = vdwg.mxu0
    %v337 = vmax.f32 %v333, 0.0
    %v338 = vmax.f32 %v335, 0.0
    %340 = vrot.lane.b32.xlu0 %v337, 64
    %v341 = vpop.permute.xlu0 %340
    %v343 = vmax.f32 %v337, %v341
    %345 = vrot.lane.b32.xlu0 %v338, 64
    %v346 = vpop.permute.xlu0 %345
    %v348 = vmax.f32 %v338, %v346
    %350 = vrot.lane.b32.xlu0 %v348, 64
    %v351 = vpop.permute.xlu0 %350
    %v353 = vsel %vm218, %v343, %v351
    %v354 = vld [vmem:[#allocation8] sm:$0xff]
    %v355 = vld [vmem:[#allocation8 + $0x8] sm:$0xff]
    %v356 = vld [vmem:[#allocation8 + $0x10] sm:$0xff]
    %v357 = vld [vmem:[#allocation8 + $0x18] sm:$0xff]
    %v358 = vld [vmem:[#allocation8 + $0x20] sm:$0xff]
    %v359 = vld [vmem:[#allocation8 + $0x28] sm:$0xff]
    %v360 = vld [vmem:[#allocation8 + $0x30] sm:$0xff]
    %v361 = vld [vmem:[#allocation8 + $0x38] sm:$0xff]
    %v362 = vld [vmem:[#allocation8 + $0x40] sm:$0xff]
    %v363 = vld [vmem:[#allocation8 + $0x48] sm:$0xff]
    %v364 = vld [vmem:[#allocation8 + $0x50] sm:$0xff]
    %v365 = vld [vmem:[#allocation8 + $0x58] sm:$0xff]
    %v366 = vld [vmem:[#allocation8 + $0x60] sm:$0xff]
    %v367 = vld [vmem:[#allocation8 + $0x68] sm:$0xff]
    %v368 = vld [vmem:[#allocation8 + $0x70] sm:$0xff]
    %v369 = vld [vmem:[#allocation8 + $0x78] sm:$0xff]
    %v370 = vld [vmem:[%s6] sm:$0x1]
    %v372 = vlaneseq
    %v373 = vshrl.u32 %v372, 7
    %v374 = vsub.s32 0, %v373
    %v375 = vrot.slane %v370, %v374
    %377 = vmatprep.subr.mxu0 0.0
    %378 = vmatpush1.msra.mxu0 %v354
    %379 = vmatprep.subr.mxu0 0.0
    %380 = vmatpush1.msra.mxu0 %v355
    %381 = vmatprep.subr.mxu0 0.0
    %382 = vmatpush1.msra.mxu0 %v356
    %383 = vmatprep.subr.mxu0 0.0
    %384 = vmatpush1.msra.mxu0 %v357
    %385 = vmatprep.subr.mxu0 0.0
    %386 = vmatpush1.msra.mxu0 %v358
    %387 = vmatprep.subr.mxu0 0.0
    %388 = vmatpush1.msra.mxu0 %v359
    %389 = vmatprep.subr.mxu0 0.0
    %390 = vmatpush1.msra.mxu0 %v360
    %391 = vmatprep.subr.mxu0 0.0
    %392 = vmatpush1.msra.mxu0 %v361
    %393 = vmatprep.subr.mxu0 0.0
    %394 = vmatpush1.msra.mxu0 %v362
    %395 = vmatprep.subr.mxu0 0.0
    %396 = vmatpush1.msra.mxu0 %v363
    %397 = vmatprep.subr.mxu0 0.0
    %398 = vmatpush1.msra.mxu0 %v364
    %399 = vmatprep.subr.mxu0 0.0
    %400 = vmatpush1.msra.mxu0 %v365
    %401 = vmatprep.subr.mxu0 0.0
    %402 = vmatpush1.msra.mxu0 %v366
    %403 = vmatprep.subr.mxu0 0.0
    %404 = vmatpush1.msra.mxu0 %v367
    %405 = vmatprep.subr.mxu0 0.0
    %406 = vmatpush1.msra.mxu0 %v368
    %407 = vmatprep.subr.mxu0 0.0
    %408 = vmatpush1.msra.mxu0 %v369
    %409 = vmatprep.subr.mxu0 0.0
    %410 = vmatpush1.msra.mxu0 0.0
    %411 = vmatprep.subr.mxu0 0.0
    %412 = vmatpush1.msra.mxu0 0.0
    %413 = vmatprep.subr.mxu0 0.0
    %414 = vmatpush1.msra.mxu0 0.0
    %415 = vmatprep.subr.mxu0 0.0
    %416 = vmatpush1.msra.mxu0 0.0
    %417 = vmatprep.subr.mxu0 0.0
    %418 = vmatpush1.msra.mxu0 0.0
    %419 = vmatprep.subr.mxu0 0.0
    %420 = vmatpush1.msra.mxu0 0.0
    %421 = vmatprep.subr.mxu0 0.0
    %422 = vmatpush1.msra.mxu0 0.0
    %423 = vmatprep.subr.mxu0 0.0
    %424 = vmatpush1.msra.mxu0 0.0
    %425 = vmatprep.subr.mxu0 0.0
    %426 = vmatpush1.msra.mxu0 0.0
    %427 = vmatprep.subr.mxu0 0.0
    %428 = vmatpush1.msra.mxu0 0.0
    %429 = vmatprep.subr.mxu0 0.0
    %430 = vmatpush1.msra.mxu0 0.0
    %431 = vmatprep.subr.mxu0 0.0
    %432 = vmatpush1.msra.mxu0 0.0
    %433 = vmatprep.subr.mxu0 0.0
    %434 = vmatpush1.msra.mxu0 0.0
    %435 = vmatprep.subr.mxu0 0.0
    %436 = vmatpush1.msra.mxu0 0.0
    %437 = vmatprep.subr.mxu0 0.0
    %438 = vmatpush1.msra.mxu0 0.0
    %439 = vmatprep.subr.mxu0 0.0
    %440 = vmatpush1.msra.mxu0 0.0
    %441 = vmatprep.mubr.f32.mxu0 0.0
    %442 = vmatmul.mubr.f32.gmra.mrb[0].mxu0 %v353
    %v443 = vpop.f32.mrb[0].mxu0
    %v444 = vadd.f32 %v375, %v443
    %v445 = vpop.f32.mrb[0].mxu0
    %446 = vdwg.mxu0
    %v447 = vmax.f32 %v444, 0.0
    %v448 = vld [vmem:[#allocation10] sm:$0xff]
    %v449 = vld [vmem:[#allocation10 + $0x8] sm:$0xff]
    %v450 = vld [vmem:[#allocation10 + $0x10] sm:$0xff]
    %v451 = vld [vmem:[#allocation10 + $0x18] sm:$0xff]
    %v452 = vld [vmem:[#allocation10 + $0x20] sm:$0xff]
    %v453 = vld [vmem:[#allocation10 + $0x28] sm:$0xff]
    %v454 = vld [vmem:[#allocation10 + $0x30] sm:$0xff]
    %v455 = vld [vmem:[#allocation10 + $0x38] sm:$0xff]
    %v456 = vld [vmem:[#allocation10 + $0x40] sm:$0xff]
    %v457 = vld [vmem:[#allocation10 + $0x48] sm:$0xff]
    %v458 = vld [vmem:[#allocation10 + $0x50] sm:$0xff]
    %v459 = vld [vmem:[#allocation10 + $0x58] sm:$0xff]
    %v460 = vld [vmem:[#allocation10 + $0x60] sm:$0xff]
    %v461 = vld [vmem:[#allocation10 + $0x68] sm:$0xff]
    %v462 = vld [vmem:[#allocation10 + $0x70] sm:$0xff]
    %v463 = vld [vmem:[#allocation10 + $0x78] sm:$0xff]
    %v464 = vld [vmem:[%s8] sm:$0x1]
    %v466 = vlaneseq
    %v467 = vshrl.u32 %v466, 7
    %v468 = vsub.s32 0, %v467
    %v469 = vrot.slane %v464, %v468
    %471 = vmatprep.subr.mxu0 0.0
    %472 = vmatpush1.msra.mxu0 %v448
    %473 = vmatprep.subr.mxu0 0.0
    %474 = vmatpush1.msra.mxu0 %v449
    %475 = vmatprep.subr.mxu0 0.0
    %476 = vmatpush1.msra.mxu0 %v450
    %477 = vmatprep.subr.mxu0 0.0
    %478 = vmatpush1.msra.mxu0 %v451
    %479 = vmatprep.subr.mxu0 0.0
    %480 = vmatpush1.msra.mxu0 %v452
    %481 = vmatprep.subr.mxu0 0.0
    %482 = vmatpush1.msra.mxu0 %v453
    %483 = vmatprep.subr.mxu0 0.0
    %484 = vmatpush1.msra.mxu0 %v454
    %485 = vmatprep.subr.mxu0 0.0
    %486 = vmatpush1.msra.mxu0 %v455
    %487 = vmatprep.subr.mxu0 0.0
    %488 = vmatpush1.msra.mxu0 %v456
    %489 = vmatprep.subr.mxu0 0.0
    %490 = vmatpush1.msra.mxu0 %v457
    %491 = vmatprep.subr.mxu0 0.0
    %492 = vmatpush1.msra.mxu0 %v458
    %493 = vmatprep.subr.mxu0 0.0
    %494 = vmatpush1.msra.mxu0 %v459
    %495 = vmatprep.subr.mxu0 0.0
    %496 = vmatpush1.msra.mxu0 %v460
    %497 = vmatprep.subr.mxu0 0.0
    %498 = vmatpush1.msra.mxu0 %v461
    %499 = vmatprep.subr.mxu0 0.0
    %500 = vmatpush1.msra.mxu0 %v462
    %501 = vmatprep.subr.mxu0 0.0
    %502 = vmatpush1.msra.mxu0 %v463
    %503 = vmatprep.subr.mxu0 0.0
    %504 = vmatpush1.msra.mxu0 0.0
    %505 = vmatprep.subr.mxu0 0.0
    %506 = vmatpush1.msra.mxu0 0.0
    %507 = vmatprep.subr.mxu0 0.0
    %508 = vmatpush1.msra.mxu0 0.0
    %509 = vmatprep.subr.mxu0 0.0
    %510 = vmatpush1.msra.mxu0 0.0
    %511 = vmatprep.subr.mxu0 0.0
    %512 = vmatpush1.msra.mxu0 0.0
    %513 = vmatprep.subr.mxu0 0.0
    %514 = vmatpush1.msra.mxu0 0.0
    %515 = vmatprep.subr.mxu0 0.0
    %516 = vmatpush1.msra.mxu0 0.0
    %517 = vmatprep.subr.mxu0 0.0
    %518 = vmatpush1.msra.mxu0 0.0
    %519 = vmatprep.subr.mxu0 0.0
    %520 = vmatpush1.msra.mxu0 0.0
    %521 = vmatprep.subr.mxu0 0.0
    %522 = vmatpush1.msra.mxu0 0.0
    %523 = vmatprep.subr.mxu0 0.0
    %524 = vmatpush1.msra.mxu0 0.0
    %525 = vmatprep.subr.mxu0 0.0
    %526 = vmatpush1.msra.mxu0 0.0
    %527 = vmatprep.subr.mxu0 0.0
    %528 = vmatpush1.msra.mxu0 0.0
    %529 = vmatprep.subr.mxu0 0.0
    %530 = vmatpush1.msra.mxu0 0.0
    %531 = vmatprep.subr.mxu0 0.0
    %532 = vmatpush1.msra.mxu0 0.0
    %533 = vmatprep.subr.mxu0 0.0
    %534 = vmatpush1.msra.mxu0 0.0
    %535 = vmatprep.mubr.f32.mxu0 0.0
    %536 = vmatmul.mubr.f32.gmra.mrb[0].mxu0 %v447
    %v537 = vpop.f32.mrb[0].mxu0
    %v538 = vadd.f32 %v469, %v537
    %v539 = vpop.f32.mrb[0].mxu0
    %540 = vdwg.mxu0
    %541 = vst [vmem:[#allocation11] sm:$0xff] %v538
    // Predicated region
    $region58: #{tpu_custom_call.1} parent=1 // pred_check
      _
    $region59: #{tpu_custom_call.1} parent=1 // pred_check_branch
      %543 = sbr.rel (0) target = $region61
    $region60: #{tpu_custom_call.1} parent=1 // pred_region
      %s545 = ssub.s32 128, 128
      %546 = vsyncadd [#allocation4], %s545
      %s548 = sshll.u32 [#allocation11], 4
      %s549 = int_to_ptr.vmem [resolvable:$true] %s548
      %551 = dma.vmem_to_hbm [thread:$0]  %s549, 128, %s9, [#allocation4]
    $region61: #{tpu_custom_call.1} parent=1 // pred_fallthru
      _
    // Predicated region
    $region62: #{tpu_custom_call.1} parent=1 // pred_check
      _
    $region63: #{tpu_custom_call.1} parent=1 // pred_check_branch
      %553 = sbr.rel (0) target = $region65
    $region64: #{tpu_custom_call.1} parent=1 // pred_region
      %554 = dma.done [#allocation4], 128
    $region65: #{tpu_custom_call.1} parent=1 // pred_fallthru
      _
    %555 = vsyncpa [#allocation3], 1
    %556 = vsyncpa [#allocation6], 1
    %557 = vsyncpa [#allocation9], 1
    %558 = vsyncpa [#allocation4], 1

</llo_original>
